<compile_context>
chip_gen: v7x
topology: tpu7x:2x2x1
jax: 0.10.0
libtpu: 0.0.40
codegen_flags: <defaults>
</compile_context>

<pallas_src>
import functools
import math

import jax
import jax.numpy as jnp
from jax.experimental import pallas as pl
from jax.experimental.pallas import tpu as pltpu


def _rope_kernel(scale_ref, shift_ref, cos_ref, sin_ref, *, tile, mode):
    # scale_ref/shift_ref: (1, W) f32 rows (per-lane frequency / position-offset
    #                      folded constants), broadcast over positions.
    # cos_ref/sin_ref:     (tile, out_w) output slabs.
    #   mode == "half":   W = dim // 2, out_w = dim   (compute half, store twice)
    #   mode == "full":   W = dim,      out_w = dim   (dim multiple of 128)
    #   mode == "packed": W = k * dim,  out_w = k*dim (k positions per row)
    i = pl.program_id(0)
    w = scale_ref.shape[-1]

    # (tile, 1) row-index column: one small iota + cast, fused into the FMA by
    # broadcasting (avoids a full-width int iota + full-width int->f32 cast).
    row = (i * tile + jax.lax.broadcasted_iota(jnp.int32, (tile, 1), 0)).astype(
        jnp.float32
    )
    angle = row * scale_ref[...] + shift_ref[...]          # (tile, W), f32
    c = jnp.cos(angle).astype(cos_ref.dtype)
    s = jnp.sin(angle).astype(sin_ref.dtype)

    if mode == "half":
        # emb = cat(freqs, freqs): duplicate via two aligned full-lane slice
        # stores (W % 128 == 0 guaranteed by the wrapper) -- no concatenate,
        # no extra (tile, dim) temporary, vregs are reused directly.
        cos_ref[:, :w] = c
        cos_ref[:, w:] = c
        sin_ref[:, :w] = s
        sin_ref[:, w:] = s
    else:
        cos_ref[...] = c
        sin_ref[...] = s


def _pick_tile(rows, out_w, dt_size, *, target_bytes=1 << 20, max_footprint=24 << 20):
    """Adaptive row tile: ~1 MiB output slab / step, >=4 grid steps when possible,
    double-buffered footprint (2 outs x 2 bufs) capped for v7x's 64 MiB VMEM."""
    sub = 16 if dt_size < 4 else 8                       # sublane packing of dtype
    if rows <= sub:
        return rows                                      # full-extent block
    tile = target_bytes // (out_w * dt_size)
    tile = min(tile, max(sub, rows // 4))                # keep >=~4 steps (v7x 2 TCs)
    tile = min(tile, max_footprint // (4 * out_w * dt_size))
    tile = max(sub, (tile // sub) * sub)                 # row block multiple of 8/16
    return min(tile, rows)


def rotary_embedding(dim, seq_len, *, dtype=jnp.float32):
    """Equivalent of RotaryEmbedding(dim).forward(x, seq_len) -> (cos, sin)."""
    assert dim % 2 == 0
    half = dim // 2
    dt_size = jnp.dtype(dtype).itemsize

    # Deterministic buffer exactly as in __init__ (f32 for angle precision).
    inv_freq = 1.0 / (10000.0 ** (jnp.arange(0, dim, 2, dtype=jnp.float32) / dim))

    # Lane-dense packing factor: k*dim is a multiple of 128 for any even dim.
    k = 128 // math.gcd(dim, 128)

    if k == 1:
        # dim is a multiple of 128.
        if half % 128 == 0:
            # Half-compute path: evaluate cos/sin on dim//2 lanes, store twice.
            mode = "half"
            w, out_w = half, dim
            scale_row = inv_freq.reshape(1, w)
            shift_row = jnp.zeros((1, w), jnp.float32)
        else:
            # dim = 128, 384, ...: full-width 128-lane compute (half-width would
            # run at half lane utilization; same cycles, cleaner stores).
            mode = "full"
            w = out_w = dim
            scale_row = jnp.concatenate([inv_freq, inv_freq]).reshape(1, w)
            shift_row = jnp.zeros((1, w), jnp.float32)
        rows = seq_len
    else:
        # Packed path: fold k consecutive positions into one lane-dense row.
        #   angle[r, l] = (r*k + l // dim) * inv_freq[(l % dim) % half]
        #               = r * scale[l] + shift[l]
        mode = "packed"
        w = out_w = k * dim
        full = jnp.concatenate([inv_freq, inv_freq])              # (dim,)
        packed = jnp.tile(full, (k,))                             # (k*dim,)
        poff = jnp.repeat(jnp.arange(k, dtype=jnp.float32), dim)  # (k*dim,) = l // dim
        scale_row = (float(k) * packed).reshape(1, w)
        shift_row = (poff * packed).reshape(1, w)
        rows = (seq_len + k - 1) // k                             # padded tail row

    tile = _pick_tile(rows, out_w, dt_size)
    grid = (pl.cdiv(rows, tile),)

    kernel = functools.partial(_rope_kernel, tile=tile, mode=mode)

    cost = pl.CostEstimate(
        flops=2 * rows * w,                       # one FMA per angle element
        transcendentals=2 * rows * w,             # cos + sin
        bytes_accessed=2 * rows * out_w * dt_size + 2 * w * 4,
    )

    cos_p, sin_p = pl.pallas_call(
        kernel,
        out_shape=(
            jax.ShapeDtypeStruct((rows, out_w), dtype),
            jax.ShapeDtypeStruct((rows, out_w), dtype),
        ),
        grid=grid,
        in_specs=[
            pl.BlockSpec((1, w), lambda i: (0, 0)),
            pl.BlockSpec((1, w), lambda i: (0, 0)),
        ],
        out_specs=(
            pl.BlockSpec((tile, out_w), lambda i: (i, 0)),
            pl.BlockSpec((tile, out_w), lambda i: (i, 0)),
        ),
        compiler_params=pltpu.CompilerParams(
            dimension_semantics=("parallel",),    # v7x: shard rows across both TCs
        ),
        cost_estimate=cost,
    )(scale_row, shift_row)

    # Un-pack (free contiguous reshape), drop pad positions, add the PyTorch
    # leading broadcast dims.
    cos = cos_p.reshape(-1, dim)[:seq_len]
    sin = sin_p.reshape(-1, dim)[:seq_len]
    return cos[None, None, :, :], sin[None, None, :, :]


def _reference(dim, seq_len):
    inv_freq = 1.0 / (10000.0 ** (jnp.arange(0, dim, 2, dtype=jnp.float32) / dim))
    t = jnp.arange(seq_len, dtype=jnp.float32)
    freqs = jnp.einsum("i,j->ij", t, inv_freq)
    emb = jnp.concatenate([freqs, freqs], axis=-1)
    return jnp.cos(emb)[None, None, :, :], jnp.sin(emb)[None, None, :, :]


if __name__ == "__main__":
    key = jax.random.PRNGKey(0)
    batch, heads, seq_len, dim = 2, 4, 8, 32
    # `x` is only used for device/dtype in the reference module; build it anyway.
    x = jax.random.normal(key, (batch, heads, seq_len, dim), dtype=jnp.float32)

    # (dim, seq_len) cases:
    #   (32, 8)   -> packed path, k=4, single full-extent block
    #   (64, 19)  -> packed path, k=2, seq_len % k != 0 (padded tail) + partial tile
    #   (128, 16) -> full-width 128-lane path, multi-step grid
    #   (256, 36) -> half-compute + duplicate-at-store path, partial tail tile
    cases = [(dim, seq_len), (64, 19), (128, 16), (256, 36)]
    for d, s in cases:
        cos, sin = rotary_embedding(d, s)
        jax.block_until_ready((cos, sin))
        ref_cos, ref_sin = _reference(d, s)
        assert cos.shape == (1, 1, s, d) and sin.shape == (1, 1, s, d), (d, s)
        assert jnp.allclose(cos, ref_cos, atol=1e-5), f"cos mismatch dim={d} seq={s}"
        assert jnp.allclose(sin, ref_sin, atol=1e-5), f"sin mismatch dim={d} seq={s}"

    print("KERNEL_OK")
</pallas_src>

<mosaic_0001>
module attributes {stable_mosaic.version = 11 : i64} {
  func.func @_rope_kernel(%arg0: i32, %arg1: memref<1x128xf32, #tpu.memory_space<vmem>>, %arg2: memref<1x128xf32, #tpu.memory_space<vmem>>, %arg3: memref<2x128xf32, #tpu.memory_space<vmem>>, %arg4: memref<2x128xf32, #tpu.memory_space<vmem>>) attributes {dimension_semantics = [#tpu.dimension_semantics<parallel>], iteration_bounds = array<i64: 1>, scalar_prefetch = 0 : i64, scratch_operands = 0 : i64, tpu.core_type = #tpu.core_type<tc>, window_params = [{pipeline_mode = #tpu.pipeline_mode<synchronous>, transform_indices = @transform_0, window_bounds = array<i64: 1, 128>}, {pipeline_mode = #tpu.pipeline_mode<synchronous>, transform_indices = @transform_1, window_bounds = array<i64: 1, 128>}, {transform_indices = @transform_2, window_bounds = array<i64: 2, 128>}, {transform_indices = @transform_3, window_bounds = array<i64: 2, 128>}]} {
    %c2_i32 = arith.constant 2 : i32
    %0 = arith.muli %arg0, %c2_i32 : i32
    %1 = tpu.iota {dimensions = array<i32: 0>} : vector<2x1xi32>
    %2 = vector.broadcast %0 : i32 to vector<2x1xi32>
    %3 = arith.addi %2, %1 : vector<2x1xi32>
    %4 = arith.sitofp %3 : vector<2x1xi32> to vector<2x1xf32>
    %c0 = arith.constant 0 : index
    %c0_0 = arith.constant 0 : index
    %5 = vector.load %arg1[%c0, %c0_0] : memref<1x128xf32, #tpu.memory_space<vmem>>, vector<1x128xf32>
    %6 = vector.broadcast %4 : vector<2x1xf32> to vector<2x128xf32>
    %7 = vector.broadcast %5 : vector<1x128xf32> to vector<2x128xf32>
    %8 = arith.mulf %6, %7 : vector<2x128xf32>
    %c0_1 = arith.constant 0 : index
    %c0_2 = arith.constant 0 : index
    %9 = vector.load %arg2[%c0_1, %c0_2] : memref<1x128xf32, #tpu.memory_space<vmem>>, vector<1x128xf32>
    %10 = vector.broadcast %9 : vector<1x128xf32> to vector<2x128xf32>
    %11 = arith.addf %8, %10 : vector<2x128xf32>
    %12 = math.cos %11 : vector<2x128xf32>
    %13 = math.sin %11 : vector<2x128xf32>
    %c0_3 = arith.constant 0 : index
    %c0_4 = arith.constant 0 : index
    %14 = vector.load %arg3[%c0_3, %c0_4] : memref<2x128xf32, #tpu.memory_space<vmem>>, vector<2x128xf32>
    tpu.vector_store %arg3[%c0_3, %c0_4], %12 {strides = array<i32>} : memref<2x128xf32, #tpu.memory_space<vmem>>, vector<2x128xf32>,
    %c0_5 = arith.constant 0 : index
    %c0_6 = arith.constant 0 : index
    %15 = vector.load %arg4[%c0_5, %c0_6] : memref<2x128xf32, #tpu.memory_space<vmem>>, vector<2x128xf32>
    tpu.vector_store %arg4[%c0_5, %c0_6], %13 {strides = array<i32>} : memref<2x128xf32, #tpu.memory_space<vmem>>, vector<2x128xf32>,
    return
  }
  func.func @transform_0(%arg0: i32) -> (i32, i32) {
    %c0_i32 = arith.constant 0 : i32
    %c0_i32_0 = arith.constant 0 : i32
    %c0_i32_1 = arith.constant 0 : i32
    return %c0_i32, %c0_i32_0 : i32, i32
  }
  func.func @transform_1(%arg0: i32) -> (i32, i32) {
    %c0_i32 = arith.constant 0 : i32
    %c0_i32_0 = arith.constant 0 : i32
    %c0_i32_1 = arith.constant 0 : i32
    return %c0_i32, %c0_i32_0 : i32, i32
  }
  func.func @transform_2(%arg0: i32) -> (i32, i32) {
    %c0_i32 = arith.constant 0 : i32
    %c0_i32_0 = arith.constant 0 : i32
    return %arg0, %c0_i32 : i32, i32
  }
  func.func @transform_3(%arg0: i32) -> (i32, i32) {
    %c0_i32 = arith.constant 0 : i32
    %c0_i32_0 = arith.constant 0 : i32
    return %arg0, %c0_i32 : i32, i32
  }
}

</mosaic_0001>

<llo_original>
// kernel: tpu_custom_call.1
$region0: #{tpu_custom_call.1}
  #allocation0 [shape = 'u32[]', space=smem, size = 0x4, offset = 0x4, fixed_abs, tag = 'smem constant byte address 0x4 - core index']
  #allocation1 [shape = 'u32[144,128]{1,0:T(1,128)}', space=vmem, size = 0x12000, scoped, tag = 'internal scratch']
  %s0 = inlined_call_operand.hbm [shape: f32[1,128], index: 0, kind: input, shape index: {}]
  %s1 = inlined_call_operand.vmem [shape: f32[1,128], index: 1, kind: input, shape index: {}]
  %s2 = inlined_call_operand.hbm [shape: f32[2,128], index: 2, kind: output, shape index: {0}]
  %s3 = inlined_call_operand.hbm [shape: f32[2,128], index: 3, kind: output, shape index: {1}]
  %4 = xla_tuple %s2, %s3
  %s5 = sld [smem:[#allocation0]]
  $region30: #{tpu_custom_call.1} parent=0
    _
  %s7 = ssub.s32 1, %s5
  %s8 = scalar_select 0, %s7, %s5
  $region1: #{tpu_custom_call.1} parent=0
    #allocation2 [shape = 'u8[512]{0}', space=vmem, size = 0x400, scoped, tag = 'input window, operand 0, single buffered']
    #allocation3 [shape = 's32[1]{0}', space=sflag, size = 0x4, scoped, tag = 'scoped memory for tpu_custom_call.1']
    #allocation4 [shape = 's32[1]{0}', space=sflag, size = 0x4, scoped, tag = 'scoped memory for tpu_custom_call.1']
    #allocation5 [shape = 'u8[1024]{0}', space=vmem, size = 0x400, scoped, tag = 'output window, operand 0, single buffered']
    #allocation6 [shape = 'u8[1024]{0}', space=vmem, size = 0x400, scoped, tag = 'output window, operand 1, single buffered']
    #allocation7 [shape = 's32[1]{0}', space=sflag, size = 0x4, scoped, tag = 'scoped memory for tpu_custom_call.1']
    %9 = vsyncpa [#allocation3], 0
    %10 = vsyncpa [#allocation4], 0
    %11 = vsyncpa [#allocation7], 0
    // Predicated region
    $region2: #{tpu_custom_call.1} parent=1 // pred_check
      _
    $region3: #{tpu_custom_call.1} parent=1 // pred_check_branch
      %13 = sbr.rel (0) target = $region5
    $region4: #{tpu_custom_call.1} parent=1 // pred_region
      %s15 = ssub.s32 16, 16
      %16 = vsyncadd [#allocation3], %s15
      %s18 = sshll.u32 [#allocation2], 4
      %s19 = int_to_ptr.vmem [resolvable:$true] %s18
      %21 = dma.hbm_to_vmem [thread:$0]  %s0, 16, %s19, [#allocation3]
    $region5: #{tpu_custom_call.1} parent=1 // pred_fallthru
      _
    // Predicated region
    $region6: #{tpu_custom_call.1} parent=1 // pred_check
      _
    $region7: #{tpu_custom_call.1} parent=1 // pred_check_branch
      %23 = sbr.rel (0) target = $region9
    $region8: #{tpu_custom_call.1} parent=1 // pred_region
      _
    $region9: #{tpu_custom_call.1} parent=1 // pred_fallthru
      _
    // Predicated region
    $region10: #{tpu_custom_call.1} parent=1 // pred_check
      _
    $region11: #{tpu_custom_call.1} parent=1 // pred_check_branch
      %25 = sbr.rel (0) target = $region13
    $region12: #{tpu_custom_call.1} parent=1 // pred_region
      %26 = dma.done [#allocation3], 16
    $region13: #{tpu_custom_call.1} parent=1 // pred_fallthru
      _
    %s27 = smul.u32 0, 2
    %v28 = vlaneseq
    %v29 = vshrl.u32 %v28, 7
    %v30 = vstv %s27
    %v31 = vadd.s32 %v30, %v29
    %v32 = vcvt.s32.f32 %v31
    %v33 = vld [vmem:[#allocation2] sm:$0x1]
    %v35 = vlaneseq
    %v36 = vshrl.u32 %v35, 7
    %v37 = vsub.s32 0, %v36
    %v38 = vrot.slane %v33, %v37
    %v40 = vmul.f32 %v32, %v38
    %v41 = vld [vmem:[%s1] sm:$0x1]
    %v43 = vlaneseq
    %v44 = vshrl.u32 %v43, 7
    %v45 = vsub.s32 0, %v44
    %v46 = vrot.slane %v41, %v45
    %v48 = vadd.f32 %v40, %v46
    %v49 = vand.u32 2147483647, %v48
    %vm50 = vcmp.le.f32.partialorder %v49, 0.7853982
    %vm51 = vcmp.lt.s32.totalorder %v48, 0
    %v52 = vand.u32 %v48, 2139095040
    %v53 = vshrl.u32 %v52, 23
    %v54 = vsub.s32 %v53, 127
    %v55 = vand.u32 2147483647, %v48
    %v56 = vand.u32 %v55, 8388607
    %v57 = vor.u32 %v56, 8388608
    %v58 = vsub.s32 0, %v57
    %v59 = vadd.s32 %v54, 1
    %vm60 = vcmp.gt.s32.totalorder %v59, 0
    %v61 = vsel %vm60, %v59, 0
    %v62 = vshrl.u32 %v61, 5
    %v63 = vand.u32 %v61, 31
    %v64 = vsub.s32 32, %v63
    %v65 = vshrl.u32 683565275, %v64
    %v66 = vshll.u32 683565275, %v63
    %v67 = vshrl.u32 2475754826, %v64
    %v68 = vor.u32 %v66, %v67
    %v69 = vshll.u32 2475754826, %v63
    %v70 = vshrl.u32 2131351028, %v64
    %v71 = vor.u32 %v69, %v70
    %v72 = vshll.u32 2131351028, %v63
    %v73 = vshrl.u32 2102212464, %v64
    %v74 = vor.u32 %v72, %v73
    %v75 = vshll.u32 2102212464, %v63
    %v76 = vshrl.u32 920167782, %v64
    %v77 = vor.u32 %v75, %v76
    %v78 = vshll.u32 920167782, %v63
    %v79 = vshrl.u32 1326507024, %v64
    %v80 = vor.u32 %v78, %v79
    %vm81 = vcmp.lt.s32.totalorder %v62, 1
    %vm82 = vcmp.lt.s32.totalorder %v62, 2
    %vm83 = vcmp.lt.s32.totalorder %v62, 3
    %vm84 = vcmp.lt.s32.totalorder %v62, 4
    %v85 = vsel %vm81, %v65, %v68
    %v86 = vsel %vm84, %v74, 2102212464
    %v87 = vsel %vm83, %v71, %v86
    %v88 = vsel %vm82, %v85, %v87
    %v89 = vsel %vm81, %v68, %v71
    %v90 = vsel %vm84, %v77, 920167782
    %v91 = vsel %vm83, %v74, %v90
    %v92 = vsel %vm82, %v89, %v91
    %v93 = vsel %vm81, %v71, %v74
    %v94 = vsel %vm84, %v80, 1326507024
    %v95 = vsel %vm83, %v77, %v94
    %v96 = vsel %vm82, %v93, %v95
    %v97 = vshll.u32 %v57, 8
    %v98 = vmul.u32.u64.compose %v97, %v96
    %v99 = vextract.low.u32 %v98
    %v100 = vextract.high.u32 %v98
    %v101 = vmul.u32.u64.compose %v97, %v92
    %v102 = vextract.low.u32 %v101
    %v103 = vextract.high.u32 %v101
    %v104 = vmul.u32 %v97, %v88
    %v105 = vadd.s32 %v100, %v102
    %vm106 = vc.u32 %v100, %v102
    %v107 = vadd.s32 %v103, 1
    %v108 = vsel %vm106, %v107, %v103
    %v109 = vadd.s32 %v104, %v108
    %v110 = vadd.s32 %v109, 536870912
    %v111 = vshrl.u32 %v110, 30
    %v112 = vshll.u32 %v111, 30
    %v113 = vsub.s32 %v109, %v112
    %vm114 = vcmp.lt.s32.totalorder %v113, 0
    %v115 = vsub.s32 0, %v113
    %v116 = vsel %vm114, %v115, %v113
    %v117 = vclz %v116
    %v118 = vsub.s32 %v117, 2
    %vm119 = vcmp.gt.s32.totalorder 0, %v118
    %v120 = vsel %vm119, 0, %v118
    %v121 = vsub.s32 32, %v120
    %v122 = vshll.u32 %v113, %v120
    %v123 = vshrl.u32 %v105, %v121
    %v124 = vor.u32 %v122, %v123
    %v125 = vsub.s32 4294967266, %v120
    %v126 = vadd.s32 %v125, 127
    %v127 = vshll.u32 %v126, 23
    %v128 = vor.u32 4788187, %v127
    %v129 = vand.u32 2147483647, %v128
    %v131 = vcvt.s32.f32 %v124
    %v132 = vmul.f32 %v131, %v129
    %v133 = vxor.u32 %v132, 2147483648
    %v134 = vsel %vm51, %v133, %v132
    %v135 = vsub.s32 4, %v111
    %v136 = vsel %vm51, %v135, %v111
    %v137 = vsel %vm50, %v48, %v134
    %v138 = vsel %vm50, 0, %v136
    %v139 = vcosq.f32.pop %v137
    %v140 = vsinq.f32.pop %v137
    %vm141 = vweird.f32 %v48
    %v142 = vand.u32 %v138, 3
    %vm143 = vcmp.lt.s32.totalorder %v142, 2
    %vm144 = vcmp.eq.s32.totalorder %v142, 0
    %v145 = vxor.u32 %v140, 2147483648
    %v146 = vsel %vm144, %v139, %v145
    %vm147 = vcmp.eq.s32.totalorder %v142, 2
    %v148 = vxor.u32 %v139, 2147483648
    %v149 = vsel %vm147, %v148, %v140
    %v150 = vsel %vm143, %v146, %v149
    %v151 = vsel %vm141, nan, %v150
    %v152 = vand.u32 2147483647, %v48
    %vm153 = vcmp.le.f32.partialorder %v152, 0.7853982
    %vm154 = vcmp.lt.s32.totalorder %v48, 0
    %v155 = vand.u32 %v48, 2139095040
    %v156 = vshrl.u32 %v155, 23
    %v157 = vsub.s32 %v156, 127
    %v158 = vand.u32 2147483647, %v48
    %v159 = vand.u32 %v158, 8388607
    %v160 = vor.u32 %v159, 8388608
    %v161 = vsub.s32 0, %v160
    %v162 = vadd.s32 %v157, 1
    %vm163 = vcmp.gt.s32.totalorder %v162, 0
    %v164 = vsel %vm163, %v162, 0
    %v165 = vshrl.u32 %v164, 5
    %v166 = vand.u32 %v164, 31
    %v167 = vsub.s32 32, %v166
    %v168 = vshrl.u32 683565275, %v167
    %v169 = vshll.u32 683565275, %v166
    %v170 = vshrl.u32 2475754826, %v167
    %v171 = vor.u32 %v169, %v170
    %v172 = vshll.u32 2475754826, %v166
    %v173 = vshrl.u32 2131351028, %v167
    %v174 = vor.u32 %v172, %v173
    %v175 = vshll.u32 2131351028, %v166
    %v176 = vshrl.u32 2102212464, %v167
    %v177 = vor.u32 %v175, %v176
    %v178 = vshll.u32 2102212464, %v166
    %v179 = vshrl.u32 920167782, %v167
    %v180 = vor.u32 %v178, %v179
    %v181 = vshll.u32 920167782, %v166
    %v182 = vshrl.u32 1326507024, %v167
    %v183 = vor.u32 %v181, %v182
    %vm184 = vcmp.lt.s32.totalorder %v165, 1
    %vm185 = vcmp.lt.s32.totalorder %v165, 2
    %vm186 = vcmp.lt.s32.totalorder %v165, 3
    %vm187 = vcmp.lt.s32.totalorder %v165, 4
    %v188 = vsel %vm184, %v168, %v171
    %v189 = vsel %vm187, %v177, 2102212464
    %v190 = vsel %vm186, %v174, %v189
    %v191 = vsel %vm185, %v188, %v190
    %v192 = vsel %vm184, %v171, %v174
    %v193 = vsel %vm187, %v180, 920167782
    %v194 = vsel %vm186, %v177, %v193
    %v195 = vsel %vm185, %v192, %v194
    %v196 = vsel %vm184, %v174, %v177
    %v197 = vsel %vm187, %v183, 1326507024
    %v198 = vsel %vm186, %v180, %v197
    %v199 = vsel %vm185, %v196, %v198
    %v200 = vshll.u32 %v160, 8
    %v201 = vmul.u32.u64.compose %v200, %v199
    %v202 = vextract.low.u32 %v201
    %v203 = vextract.high.u32 %v201
    %v204 = vmul.u32.u64.compose %v200, %v195
    %v205 = vextract.low.u32 %v204
    %v206 = vextract.high.u32 %v204
    %v207 = vmul.u32 %v200, %v191
    %v208 = vadd.s32 %v203, %v205
    %vm209 = vc.u32 %v203, %v205
    %v210 = vadd.s32 %v206, 1
    %v211 = vsel %vm209, %v210, %v206
    %v212 = vadd.s32 %v207, %v211
    %v213 = vadd.s32 %v212, 536870912
    %v214 = vshrl.u32 %v213, 30
    %v215 = vshll.u32 %v214, 30
    %v216 = vsub.s32 %v212, %v215
    %vm217 = vcmp.lt.s32.totalorder %v216, 0
    %v218 = vsub.s32 0, %v216
    %v219 = vsel %vm217, %v218, %v216
    %v220 = vclz %v219
    %v221 = vsub.s32 %v220, 2
    %vm222 = vcmp.gt.s32.totalorder 0, %v221
    %v223 = vsel %vm222, 0, %v221
    %v224 = vsub.s32 32, %v223
    %v225 = vshll.u32 %v216, %v223
    %v226 = vshrl.u32 %v208, %v224
    %v227 = vor.u32 %v225, %v226
    %v228 = vsub.s32 4294967266, %v223
    %v229 = vadd.s32 %v228, 127
    %v230 = vshll.u32 %v229, 23
    %v231 = vor.u32 4788187, %v230
    %v232 = vand.u32 2147483647, %v231
    %v234 = vcvt.s32.f32 %v227
    %v235 = vmul.f32 %v234, %v232
    %v236 = vxor.u32 %v235, 2147483648
    %v237 = vsel %vm154, %v236, %v235
    %v238 = vsub.s32 4, %v214
    %v239 = vsel %vm154, %v238, %v214
    %v240 = vsel %vm153, %v48, %v237
    %v241 = vsel %vm153, 0, %v239
    %v242 = vcosq.f32.pop %v240
    %v243 = vsinq.f32.pop %v240
    %vm244 = vweird.f32 %v48
    %v245 = vadd.s32 %v241, 3
    %v246 = vand.u32 %v245, 3
    %vm247 = vcmp.lt.s32.totalorder %v246, 2
    %vm248 = vcmp.eq.s32.totalorder %v246, 0
    %v249 = vxor.u32 %v243, 2147483648
    %v250 = vsel %vm248, %v242, %v249
    %vm251 = vcmp.eq.s32.totalorder %v246, 2
    %v252 = vxor.u32 %v242, 2147483648
    %v253 = vsel %vm251, %v252, %v243
    %v254 = vsel %vm247, %v250, %v253
    %v255 = vsel %vm244, nan, %v254
    %256 = vst [vmem:[#allocation5] sm:$0x3] %v151
    %257 = vst [vmem:[#allocation6] sm:$0x3] %v255
    // Predicated region
    $region14: #{tpu_custom_call.1} parent=1 // pred_check
      _
    $region15: #{tpu_custom_call.1} parent=1 // pred_check_branch
      %259 = sbr.rel (0) target = $region17
    $region16: #{tpu_custom_call.1} parent=1 // pred_region
      %s261 = ssub.s32 32, 32
      %262 = vsyncadd [#allocation4], %s261
      %s264 = sshll.u32 [#allocation5], 4
      %s265 = int_to_ptr.vmem [resolvable:$true] %s264
      %267 = dma.vmem_to_hbm [thread:$0]  %s265, 32, %s2, [#allocation4]
    $region17: #{tpu_custom_call.1} parent=1 // pred_fallthru
      _
    // Predicated region
    $region18: #{tpu_custom_call.1} parent=1 // pred_check
      _
    $region19: #{tpu_custom_call.1} parent=1 // pred_check_branch
      %269 = sbr.rel (0) target = $region21
    $region20: #{tpu_custom_call.1} parent=1 // pred_region
      %s271 = ssub.s32 32, 32
      %272 = vsyncadd [#allocation7], %s271
      %s274 = sshll.u32 [#allocation6], 4
      %s275 = int_to_ptr.vmem [resolvable:$true] %s274
      %277 = dma.vmem_to_hbm [thread:$0]  %s275, 32, %s3, [#allocation7]
    $region21: #{tpu_custom_call.1} parent=1 // pred_fallthru
      _
    // Predicated region
    $region22: #{tpu_custom_call.1} parent=1 // pred_check
      _
    $region23: #{tpu_custom_call.1} parent=1 // pred_check_branch
      %279 = sbr.rel (0) target = $region25
    $region24: #{tpu_custom_call.1} parent=1 // pred_region
      %280 = dma.done [#allocation4], 32
    $region25: #{tpu_custom_call.1} parent=1 // pred_fallthru
      _
    // Predicated region
    $region26: #{tpu_custom_call.1} parent=1 // pred_check
      _
    $region27: #{tpu_custom_call.1} parent=1 // pred_check_branch
      %282 = sbr.rel (0) target = $region29
    $region28: #{tpu_custom_call.1} parent=1 // pred_region
      %283 = dma.done [#allocation7], 32
    $region29: #{tpu_custom_call.1} parent=1 // pred_fallthru
      _
    %284 = vsyncpa [#allocation3], 1
    %285 = vsyncpa [#allocation4], 1
    %286 = vsyncpa [#allocation7], 1

</llo_original>
